<compile_context>
chip_gen: v6e
topology: v6e:2x2x1
jax: 0.10.0
libtpu: 0.0.40
codegen_flags: <defaults>
</compile_context>

<pallas_src>
import jax
import jax.numpy as jnp
from jax.experimental import pallas as pl
from jax.experimental.pallas import tpu as pltpu

EPS = 1e-5


# ----------------------------- host-side packing -----------------------------
def _fold_bn(gamma, beta, rmean, rvar):
    inv = gamma / jnp.sqrt(rvar + EPS)
    return inv, beta - rmean * inv


def _round_up(x, m):
    return (x + m - 1) // m * m


def _pack_params(layer_params, c0, matmul_dtype):
    """Pack per-layer params into one weight slab + one scale/shift slab.

    Returns (scale_slab f32 (S,1), weight_slab (W, 128k), metas, c_final).
    metas[l] = (c_in, c_mid, growth, off_s1, off_b1, off_b2, off_w1, off_w2),
    all static Python ints used for in-kernel slicing.
    """
    metas = []
    s_off, w_off, max_cols = 0, 0, 0
    c_in = c0
    for prm in layer_params:
        c_mid = prm["w1"].shape[0]
        growth = prm["w2"].shape[0]
        os1 = s_off; s_off += _round_up(c_in, 8)
        ob1 = s_off; s_off += _round_up(c_in, 8)
        ob2 = s_off; s_off += _round_up(c_mid, 8)
        ow1 = w_off; w_off += _round_up(c_mid, 16)
        ow2 = w_off; w_off += _round_up(3 * growth, 16)
        max_cols = max(max_cols, c_in, c_mid)
        metas.append((c_in, c_mid, growth, os1, ob1, ob2, ow1, ow2))
        c_in += growth

    s_rows = _round_up(s_off, 8)
    w_rows = _round_up(w_off, 16)
    w_cols = _round_up(max_cols, 128)

    scale = jnp.zeros((s_rows, 1), jnp.float32)
    weight = jnp.zeros((w_rows, w_cols), matmul_dtype)
    for prm, meta in zip(layer_params, metas):
        c_in_l, c_mid, growth, os1, ob1, ob2, ow1, ow2 = meta
        s1, t1 = _fold_bn(*prm["bn1"])          # (c_in,)
        s2, t2 = _fold_bn(*prm["bn2"])          # (c_mid,)
        w1 = prm["w1"]                          # (c_mid, c_in)
        w2 = prm["w2"]                          # (growth, c_mid, 3)
        # Fold BN2 scale into the 1x1 conv weight (commutes with the matmul).
        w1s = (s2[:, None] * w1).astype(matmul_dtype)
        # Stack the three k=3 taps into one contraction weight.
        w2s = jnp.concatenate([w2[:, :, 0], w2[:, :, 1], w2[:, :, 2]],
                              axis=0).astype(matmul_dtype)   # (3*growth, c_mid)
        scale = scale.at[os1:os1 + c_in_l, 0].set(s1)
        scale = scale.at[ob1:ob1 + c_in_l, 0].set(t1)
        scale = scale.at[ob2:ob2 + c_mid, 0].set(t2)
        weight = weight.at[ow1:ow1 + c_mid, 0:c_in_l].set(w1s)
        weight = weight.at[ow2:ow2 + 3 * growth, 0:c_mid].set(w2s)
    return scale, weight, metas, c_in   # c_in == c_final


# --------------------------------- kernel -----------------------------------
def _make_block_kernel(metas, c0, L, lane_chunk):
    """Fused DenseBlock kernel for one lane chunk (a whole number of samples)."""

    def kernel(x_ref, s_ref, w_ref, o_ref):
        # Pass-through channels (the torch.cat([x, out]) prefix).
        o_ref[0:c0, :] = x_ref[...]

        # Sample-boundary masks (one vreg): re-impose the k=3 conv's zero
        # padding at every L boundary inside the chunk and at the roll wrap.
        lane = jax.lax.broadcasted_iota(jnp.int32, (1, lane_chunk), 1)
        pos = lane % L
        not_first = pos != 0           # valid for the left-neighbor  tap
        not_last = pos != (L - 1)      # valid for the right-neighbor tap

        off = c0
        for (c_in, c_mid, growth, os1, ob1, ob2, ow1, ow2) in metas:
            # Current (growing) activation lives in the output VMEM block.
            cur = o_ref[0:off, :]                                 # (off, lanes)

            s1 = s_ref[os1:os1 + c_in, :]                         # (c_in, 1)
            b1 = s_ref[ob1:ob1 + c_in, :]
            b2 = s_ref[ob2:ob2 + c_mid, :]                        # (c_mid, 1)

            # BN1 (folded scale/shift) + ReLU, f32 on the VPU.
            h = jnp.maximum(cur * s1 + b1, 0.0)

            # 1x1 conv == channel matmul (BN2 scale pre-folded into w1);
            # cast to the matmul dtype only at the dot, accumulate in f32.
            w1 = w_ref[ow1:ow1 + c_mid, 0:c_in]                   # (c_mid, c_in)
            y1 = jnp.dot(w1, h.astype(w1.dtype),
                         preferred_element_type=jnp.float32)      # (c_mid, lanes)

            # BN2 shift + ReLU (scale already inside w1).
            h2 = jnp.maximum(y1 + b2, 0.0)

            # k=3, pad=1 conv: all three taps in one MXU push.
            w2 = w_ref[ow2:ow2 + 3 * growth, 0:c_mid]             # (3g, c_mid)
            a = jnp.dot(w2, h2.astype(w2.dtype),
                        preferred_element_type=jnp.float32)       # (3g, lanes)
            a0 = a[0:growth]                 # tap k=0 -> needs h2[:, l-1]
            a1 = a[growth:2 * growth]        # tap k=1 -> h2[:, l]
            a2 = a[2 * growth:3 * growth]    # tap k=2 -> needs h2[:, l+1]

            # Lane shifts on the XLU; mask wrapped / cross-sample lanes to zero.
            r0 = pltpu.roll(a0, shift=1, axis=1)               # r0[:,l]=a0[:,l-1]
            r2 = pltpu.roll(a2, shift=lane_chunk - 1, axis=1)  # r2[:,l]=a2[:,l+1]
            y2 = (a1
                  + jnp.where(not_first, r0, 0.0)
                  + jnp.where(not_last, r2, 0.0))

            o_ref[off:off + growth, :] = y2.astype(o_ref.dtype)
            off += growth

    return kernel


# --------------------------------- wrapper -----------------------------------
def _pick_samples_per_step(N, L, max_lanes=512):
    """Samples per grid step: lane chunk <= ~512, but keep >=2 steps (v7x TCs)."""
    cap = max(1, max_lanes // L)
    if N >= 2:
        cap = min(cap, N // 2)
    cap = max(cap, 1)
    for s in range(min(cap, N), 0, -1):
        if N % s == 0:
            return s
    return 1


def dense_block_pallas(x, layer_params, matmul_dtype=jnp.bfloat16):
    """x: (N, C0, L) f32. Returns (N, C0 + sum(growth), L) f32.

    Use matmul_dtype=jnp.float32 on v5e (no bf16 VPU path there).
    """
    N, c0, L = x.shape
    scale, weight, metas, c_final = _pack_params(layer_params, c0, matmul_dtype)

    sps = _pick_samples_per_step(N, L)
    lane_chunk = sps * L
    num_chunks = N // sps
    total = N * L

    # Fold batch into lanes: (N, C, L) -> (C, N*L); chunk starts are L-aligned.
    x2 = jnp.transpose(x, (1, 0, 2)).reshape(c0, total)

    kernel = _make_block_kernel(metas, c0, L, lane_chunk)
    out2 = pl.pallas_call(
        kernel,
        out_shape=jax.ShapeDtypeStruct((c_final, total), x.dtype),
        grid=(num_chunks,),
        in_specs=[
            pl.BlockSpec((c0, lane_chunk), lambda n: (0, n)),
            pl.BlockSpec(scale.shape, lambda n: (0, 0)),   # resident constants
            pl.BlockSpec(weight.shape, lambda n: (0, 0)),
        ],
        out_specs=pl.BlockSpec((c_final, lane_chunk), lambda n: (0, n)),
        compiler_params=pltpu.CompilerParams(
            dimension_semantics=("parallel",)),   # chunks shard over v7x's 2 TCs
    )(x2, scale, weight)

    return jnp.transpose(out2.reshape(c_final, N, L), (1, 0, 2))


# ---------------- pure-JAX reference (for correctness check) ----------------
def ref_dense_layer(x, params):
    gamma1, beta1, rm1, rv1 = params["bn1"]
    gamma2, beta2, rm2, rv2 = params["bn2"]
    w1, w2 = params["w1"], params["w2"]
    h = (x - rm1[None, :, None]) / jnp.sqrt(rv1[None, :, None] + EPS)
    h = jnp.maximum(h * gamma1[None, :, None] + beta1[None, :, None], 0.0)
    y1 = jnp.einsum("oc,ncl->nol", w1, h)
    h2 = (y1 - rm2[None, :, None]) / jnp.sqrt(rv2[None, :, None] + EPS)
    h2 = jnp.maximum(h2 * gamma2[None, :, None] + beta2[None, :, None], 0.0)
    L = x.shape[-1]
    hp = jnp.pad(h2, ((0, 0), (0, 0), (1, 1)))
    y2 = sum(jnp.einsum("oc,ncl->nol", w2[:, :, k], hp[:, :, k:k + L])
             for k in range(3))
    return jnp.concatenate([x, y2], axis=1)


def ref_dense_block(x, layer_params):
    for p in layer_params:
        x = ref_dense_layer(x, p)
    return x


# ---------------------- deterministic parameter setup -----------------------
def init_layer_params(key, c_in, growth, bn_size):
    c_mid = bn_size * growth
    ks = jax.random.split(key, 10)
    bn1 = (jax.random.uniform(ks[0], (c_in,), jnp.float32, 0.5, 1.5),   # gamma
           0.1 * jax.random.normal(ks[1], (c_in,), jnp.float32),        # beta
           0.1 * jax.random.normal(ks[2], (c_in,), jnp.float32),        # run_mean
           jax.random.uniform(ks[3], (c_in,), jnp.float32, 0.5, 1.5))   # run_var
    w1 = jax.random.normal(ks[4], (c_mid, c_in), jnp.float32) / jnp.sqrt(c_in)
    bn2 = (jax.random.uniform(ks[5], (c_mid,), jnp.float32, 0.5, 1.5),
           0.1 * jax.random.normal(ks[6], (c_mid,), jnp.float32),
           0.1 * jax.random.normal(ks[7], (c_mid,), jnp.float32),
           jax.random.uniform(ks[8], (c_mid,), jnp.float32, 0.5, 1.5))
    w2 = jax.random.normal(ks[9], (growth, c_mid, 3), jnp.float32) / jnp.sqrt(3 * c_mid)
    return {"bn1": bn1, "w1": w1, "bn2": bn2, "w2": w2}


if __name__ == "__main__":
    num_layers, input_channels, growth_rate, bn_size = 3, 16, 8, 4
    N, L = 2, 128

    key = jax.random.PRNGKey(0)
    key, xk = jax.random.split(key)
    x = jax.random.normal(xk, (N, input_channels, L), jnp.float32)

    layer_params = []
    c = input_channels
    for _ in range(num_layers):
        key, lk = jax.random.split(key)
        layer_params.append(init_layer_params(lk, c, growth_rate, bn_size))
        c += growth_rate

    out = dense_block_pallas(x, layer_params)
    out = jax.block_until_ready(out)

    expected_channels = input_channels + num_layers * growth_rate
    assert out.shape == (N, expected_channels, L), out.shape

    ref = jax.block_until_ready(ref_dense_block(x, layer_params))
    assert jnp.allclose(out, ref, rtol=5e-2, atol=5e-2), (
        float(jnp.max(jnp.abs(out - ref))))

    print("KERNEL_OK")
</pallas_src>

<mosaic_0001>
module attributes {stable_mosaic.version = 11 : i64} {
  func.func @kernel(%arg0: i32, %arg1: memref<16x128xf32, #tpu.memory_space<vmem>>, %arg2: memref<240x1xf32, #tpu.memory_space<vmem>>, %arg3: memref<192x128xbf16, #tpu.memory_space<vmem>>, %arg4: memref<40x128xf32, #tpu.memory_space<vmem>>) attributes {dimension_semantics = [#tpu.dimension_semantics<parallel>], iteration_bounds = array<i64: 2>, scalar_prefetch = 0 : i64, scratch_operands = 0 : i64, tpu.core_type = #tpu.core_type<tc>, window_params = [{transform_indices = @transform_0, window_bounds = array<i64: 16, 128>}, {pipeline_mode = #tpu.pipeline_mode<synchronous>, transform_indices = @transform_1, window_bounds = array<i64: 240, 1>}, {pipeline_mode = #tpu.pipeline_mode<synchronous>, transform_indices = @transform_2, window_bounds = array<i64: 192, 128>}, {transform_indices = @transform_3, window_bounds = array<i64: 40, 128>}]} {
    %c0 = arith.constant 0 : index
    %c0_0 = arith.constant 0 : index
    %0 = vector.load %arg1[%c0, %c0_0] : memref<16x128xf32, #tpu.memory_space<vmem>>, vector<16x128xf32>
    %c0_1 = arith.constant 0 : index
    %c0_2 = arith.constant 0 : index
    %1 = vector.load %arg4[%c0_1, %c0_2] : memref<40x128xf32, #tpu.memory_space<vmem>>, vector<16x128xf32>
    tpu.vector_store %arg4[%c0_1, %c0_2], %0 {strides = array<i32>} : memref<40x128xf32, #tpu.memory_space<vmem>>, vector<16x128xf32>,
    %2 = tpu.iota {dimensions = array<i32: 1>} : vector<1x128xi32>
    %c128_i32 = arith.constant 128 : i32
    %c0_i32 = arith.constant 0 : i32
    %3 = arith.cmpi eq, %c128_i32, %c0_i32 : i32
    %c1_i32 = arith.constant 1 : i32
    %4 = arith.select %3, %c1_i32, %c128_i32 : i32
    %5 = vector.broadcast %4 : i32 to vector<1x128xi32>
    %6 = arith.remsi %2, %5 : vector<1x128xi32>
    %c0_i32_3 = arith.constant 0 : i32
    %7 = vector.broadcast %c0_i32_3 : i32 to vector<1x128xi32>
    %8 = arith.cmpi ne, %6, %7 : vector<1x128xi32>
    %c0_i32_4 = arith.constant 0 : i32
    %9 = vector.broadcast %c0_i32_4 : i32 to vector<1x128xi32>
    %10 = arith.cmpi slt, %6, %9 : vector<1x128xi32>
    %c0_i32_5 = arith.constant 0 : i32
    %11 = arith.cmpi slt, %4, %c0_i32_5 : i32
    %12 = vector.broadcast %11 : i1 to vector<1x128xi1>
    %13 = vector.broadcast %12 : vector<1x128xi1> to vector<1x128xi1>
    %14 = arith.xori %10, %13 : vector<1x128xi1>
    %15 = arith.andi %14, %8 : vector<1x128xi1>
    %16 = vector.broadcast %4 : i32 to vector<1x128xi32>
    %17 = arith.addi %6, %16 : vector<1x128xi32>
    %18 = arith.select %15, %17, %6 : vector<1x128xi1>, vector<1x128xi32>
    %c0_i32_6 = arith.constant 0 : i32
    %19 = vector.broadcast %c0_i32_6 : i32 to vector<1x128xi32>
    %20 = arith.cmpi ne, %18, %19 : vector<1x128xi32>
    %c127_i32 = arith.constant 127 : i32
    %21 = vector.broadcast %c127_i32 : i32 to vector<1x128xi32>
    %22 = arith.cmpi ne, %18, %21 : vector<1x128xi32>
    %c0_7 = arith.constant 0 : index
    %c0_8 = arith.constant 0 : index
    %23 = vector.load %arg4[%c0_7, %c0_8] : memref<40x128xf32, #tpu.memory_space<vmem>>, vector<16x128xf32>
    %c0_9 = arith.constant 0 : index
    %c0_10 = arith.constant 0 : index
    %24 = vector.load %arg2[%c0_9, %c0_10] : memref<240x1xf32, #tpu.memory_space<vmem>>, vector<16x1xf32>
    %c16 = arith.constant 16 : index
    %c0_11 = arith.constant 0 : index
    %25 = vector.load %arg2[%c16, %c0_11] : memref<240x1xf32, #tpu.memory_space<vmem>>, vector<16x1xf32>
    %c32 = arith.constant 32 : index
    %c0_12 = arith.constant 0 : index
    %26 = vector.load %arg2[%c32, %c0_12] : memref<240x1xf32, #tpu.memory_space<vmem>>, vector<32x1xf32>
    %27 = vector.broadcast %24 : vector<16x1xf32> to vector<16x128xf32>
    %28 = arith.mulf %23, %27 : vector<16x128xf32>
    %29 = vector.broadcast %25 : vector<16x1xf32> to vector<16x128xf32>
    %30 = arith.addf %28, %29 : vector<16x128xf32>
    %cst = arith.constant 0.000000e+00 : f32
    %31 = vector.broadcast %cst : f32 to vector<16x128xf32>
    %32 = arith.maximumf %30, %31 : vector<16x128xf32>
    %c0_13 = arith.constant 0 : index
    %c0_14 = arith.constant 0 : index
    %33 = vector.load %arg3[%c0_13, %c0_14] : memref<192x128xbf16, #tpu.memory_space<vmem>>, vector<32x16xbf16>
    %34 = arith.truncf %32 : vector<16x128xf32> to vector<16x128xbf16>
    %cst_15 = arith.constant dense<0.000000e+00> : vector<32x128xf32>
    %35 = tpu.matmul %33, %34, %cst_15 {dimension_numbers = #tpu.dot_dimension_numbers<[1], [0], [0], [1], [0, 0, 1, 1], [], []>} : vector<32x16xbf16>, vector<16x128xbf16>, vector<32x128xf32> -> vector<32x128xf32>
    %36 = vector.broadcast %26 : vector<32x1xf32> to vector<32x128xf32>
    %37 = arith.addf %35, %36 : vector<32x128xf32>
    %cst_16 = arith.constant 0.000000e+00 : f32
    %38 = vector.broadcast %cst_16 : f32 to vector<32x128xf32>
    %39 = arith.maximumf %37, %38 : vector<32x128xf32>
    %c32_17 = arith.constant 32 : index
    %c0_18 = arith.constant 0 : index
    %40 = vector.load %arg3[%c32_17, %c0_18] : memref<192x128xbf16, #tpu.memory_space<vmem>>, vector<24x32xbf16>
    %41 = arith.truncf %39 : vector<32x128xf32> to vector<32x128xbf16>
    %cst_19 = arith.constant dense<0.000000e+00> : vector<24x128xf32>
    %42 = tpu.matmul %40, %41, %cst_19 {dimension_numbers = #tpu.dot_dimension_numbers<[1], [0], [0], [1], [0, 0, 1, 1], [], []>} : vector<24x32xbf16>, vector<32x128xbf16>, vector<24x128xf32> -> vector<24x128xf32>
    %43 = vector.extract_strided_slice %42 {offsets = [0, 0], sizes = [8, 128], strides = [1, 1]} : vector<24x128xf32> to vector<8x128xf32>
    %44 = vector.extract_strided_slice %42 {offsets = [8, 0], sizes = [8, 128], strides = [1, 1]} : vector<24x128xf32> to vector<8x128xf32>
    %45 = vector.extract_strided_slice %42 {offsets = [16, 0], sizes = [8, 128], strides = [1, 1]} : vector<24x128xf32> to vector<8x128xf32>
    %c1_i32_20 = arith.constant 1 : i32
    %46 = tpu.dynamic_rotate %43 by %c1_i32_20 dim 1 : vector<8x128xf32>, i32 -> vector<8x128xf32>
    %c127_i32_21 = arith.constant 127 : i32
    %47 = tpu.dynamic_rotate %45 by %c127_i32_21 dim 1 : vector<8x128xf32>, i32 -> vector<8x128xf32>
    %cst_22 = arith.constant 0.000000e+00 : f32
    %48 = vector.shape_cast %20 : vector<1x128xi1> to vector<1x128xi1>
    %49 = vector.broadcast %48 : vector<1x128xi1> to vector<8x128xi1>
    %50 = vector.broadcast %cst_22 : f32 to vector<8x128xf32>
    %51 = arith.select %49, %46, %50 : vector<8x128xi1>, vector<8x128xf32>
    %52 = arith.addf %44, %51 : vector<8x128xf32>
    %cst_23 = arith.constant 0.000000e+00 : f32
    %53 = vector.shape_cast %22 : vector<1x128xi1> to vector<1x128xi1>
    %54 = vector.broadcast %53 : vector<1x128xi1> to vector<8x128xi1>
    %55 = vector.broadcast %cst_23 : f32 to vector<8x128xf32>
    %56 = arith.select %54, %47, %55 : vector<8x128xi1>, vector<8x128xf32>
    %57 = arith.addf %52, %56 : vector<8x128xf32>
    %c16_24 = arith.constant 16 : index
    %c0_25 = arith.constant 0 : index
    %58 = vector.load %arg4[%c16_24, %c0_25] : memref<40x128xf32, #tpu.memory_space<vmem>>, vector<8x128xf32>
    tpu.vector_store %arg4[%c16_24, %c0_25], %57 {strides = array<i32>} : memref<40x128xf32, #tpu.memory_space<vmem>>, vector<8x128xf32>,
    %c0_26 = arith.constant 0 : index
    %c0_27 = arith.constant 0 : index
    %59 = vector.load %arg4[%c0_26, %c0_27] : memref<40x128xf32, #tpu.memory_space<vmem>>, vector<24x128xf32>
    %c64 = arith.constant 64 : index
    %c0_28 = arith.constant 0 : index
    %60 = vector.load %arg2[%c64, %c0_28] : memref<240x1xf32, #tpu.memory_space<vmem>>, vector<24x1xf32>
    %c88 = arith.constant 88 : index
    %c0_29 = arith.constant 0 : index
    %61 = vector.load %arg2[%c88, %c0_29] : memref<240x1xf32, #tpu.memory_space<vmem>>, vector<24x1xf32>
    %c112 = arith.constant 112 : index
    %c0_30 = arith.constant 0 : index
    %62 = vector.load %arg2[%c112, %c0_30] : memref<240x1xf32, #tpu.memory_space<vmem>>, vector<32x1xf32>
    %63 = vector.broadcast %60 : vector<24x1xf32> to vector<24x128xf32>
    %64 = arith.mulf %59, %63 : vector<24x128xf32>
    %65 = vector.broadcast %61 : vector<24x1xf32> to vector<24x128xf32>
    %66 = arith.addf %64, %65 : vector<24x128xf32>
    %cst_31 = arith.constant 0.000000e+00 : f32
    %67 = vector.broadcast %cst_31 : f32 to vector<24x128xf32>
    %68 = arith.maximumf %66, %67 : vector<24x128xf32>
    %c64_32 = arith.constant 64 : index
    %c0_33 = arith.constant 0 : index
    %69 = vector.load %arg3[%c64_32, %c0_33] : memref<192x128xbf16, #tpu.memory_space<vmem>>, vector<32x24xbf16>
    %70 = arith.truncf %68 : vector<24x128xf32> to vector<24x128xbf16>
    %cst_34 = arith.constant dense<0.000000e+00> : vector<32x128xf32>
    %71 = tpu.matmul %69, %70, %cst_34 {dimension_numbers = #tpu.dot_dimension_numbers<[1], [0], [0], [1], [0, 0, 1, 1], [], []>} : vector<32x24xbf16>, vector<24x128xbf16>, vector<32x128xf32> -> vector<32x128xf32>
    %72 = vector.broadcast %62 : vector<32x1xf32> to vector<32x128xf32>
    %73 = arith.addf %71, %72 : vector<32x128xf32>
    %cst_35 = arith.constant 0.000000e+00 : f32
    %74 = vector.broadcast %cst_35 : f32 to vector<32x128xf32>
    %75 = arith.maximumf %73, %74 : vector<32x128xf32>
    %c96 = arith.constant 96 : index
    %c0_36 = arith.constant 0 : index
    %76 = vector.load %arg3[%c96, %c0_36] : memref<192x128xbf16, #tpu.memory_space<vmem>>, vector<24x32xbf16>
    %77 = arith.truncf %75 : vector<32x128xf32> to vector<32x128xbf16>
    %cst_37 = arith.constant dense<0.000000e+00> : vector<24x128xf32>
    %78 = tpu.matmul %76, %77, %cst_37 {dimension_numbers = #tpu.dot_dimension_numbers<[1], [0], [0], [1], [0, 0, 1, 1], [], []>} : vector<24x32xbf16>, vector<32x128xbf16>, vector<24x128xf32> -> vector<24x128xf32>
    %79 = vector.extract_strided_slice %78 {offsets = [0, 0], sizes = [8, 128], strides = [1, 1]} : vector<24x128xf32> to vector<8x128xf32>
    %80 = vector.extract_strided_slice %78 {offsets = [8, 0], sizes = [8, 128], strides = [1, 1]} : vector<24x128xf32> to vector<8x128xf32>
    %81 = vector.extract_strided_slice %78 {offsets = [16, 0], sizes = [8, 128], strides = [1, 1]} : vector<24x128xf32> to vector<8x128xf32>
    %c1_i32_38 = arith.constant 1 : i32
    %82 = tpu.dynamic_rotate %79 by %c1_i32_38 dim 1 : vector<8x128xf32>, i32 -> vector<8x128xf32>
    %c127_i32_39 = arith.constant 127 : i32
    %83 = tpu.dynamic_rotate %81 by %c127_i32_39 dim 1 : vector<8x128xf32>, i32 -> vector<8x128xf32>
    %cst_40 = arith.constant 0.000000e+00 : f32
    %84 = vector.shape_cast %20 : vector<1x128xi1> to vector<1x128xi1>
    %85 = vector.broadcast %84 : vector<1x128xi1> to vector<8x128xi1>
    %86 = vector.broadcast %cst_40 : f32 to vector<8x128xf32>
    %87 = arith.select %85, %82, %86 : vector<8x128xi1>, vector<8x128xf32>
    %88 = arith.addf %80, %87 : vector<8x128xf32>
    %cst_41 = arith.constant 0.000000e+00 : f32
    %89 = vector.shape_cast %22 : vector<1x128xi1> to vector<1x128xi1>
    %90 = vector.broadcast %89 : vector<1x128xi1> to vector<8x128xi1>
    %91 = vector.broadcast %cst_41 : f32 to vector<8x128xf32>
    %92 = arith.select %90, %83, %91 : vector<8x128xi1>, vector<8x128xf32>
    %93 = arith.addf %88, %92 : vector<8x128xf32>
    %c24 = arith.constant 24 : index
    %c0_42 = arith.constant 0 : index
    %94 = vector.load %arg4[%c24, %c0_42] : memref<40x128xf32, #tpu.memory_space<vmem>>, vector<8x128xf32>
    tpu.vector_store %arg4[%c24, %c0_42], %93 {strides = array<i32>} : memref<40x128xf32, #tpu.memory_space<vmem>>, vector<8x128xf32>,
    %c0_43 = arith.constant 0 : index
    %c0_44 = arith.constant 0 : index
    %95 = vector.load %arg4[%c0_43, %c0_44] : memref<40x128xf32, #tpu.memory_space<vmem>>, vector<32x128xf32>
    %c144 = arith.constant 144 : index
    %c0_45 = arith.constant 0 : index
    %96 = vector.load %arg2[%c144, %c0_45] : memref<240x1xf32, #tpu.memory_space<vmem>>, vector<32x1xf32>
    %c176 = arith.constant 176 : index
    %c0_46 = arith.constant 0 : index
    %97 = vector.load %arg2[%c176, %c0_46] : memref<240x1xf32, #tpu.memory_space<vmem>>, vector<32x1xf32>
    %c208 = arith.constant 208 : index
    %c0_47 = arith.constant 0 : index
    %98 = vector.load %arg2[%c208, %c0_47] : memref<240x1xf32, #tpu.memory_space<vmem>>, vector<32x1xf32>
    %99 = vector.broadcast %96 : vector<32x1xf32> to vector<32x128xf32>
    %100 = arith.mulf %95, %99 : vector<32x128xf32>
    %101 = vector.broadcast %97 : vector<32x1xf32> to vector<32x128xf32>
    %102 = arith.addf %100, %101 : vector<32x128xf32>
    %cst_48 = arith.constant 0.000000e+00 : f32
    %103 = vector.broadcast %cst_48 : f32 to vector<32x128xf32>
    %104 = arith.maximumf %102, %103 : vector<32x128xf32>
    %c128 = arith.constant 128 : index
    %c0_49 = arith.constant 0 : index
    %105 = vector.load %arg3[%c128, %c0_49] : memref<192x128xbf16, #tpu.memory_space<vmem>>, vector<32x32xbf16>
    %106 = arith.truncf %104 : vector<32x128xf32> to vector<32x128xbf16>
    %cst_50 = arith.constant dense<0.000000e+00> : vector<32x128xf32>
    %107 = tpu.matmul %105, %106, %cst_50 {dimension_numbers = #tpu.dot_dimension_numbers<[1], [0], [0], [1], [0, 0, 1, 1], [], []>} : vector<32x32xbf16>, vector<32x128xbf16>, vector<32x128xf32> -> vector<32x128xf32>
    %108 = vector.broadcast %98 : vector<32x1xf32> to vector<32x128xf32>
    %109 = arith.addf %107, %108 : vector<32x128xf32>
    %cst_51 = arith.constant 0.000000e+00 : f32
    %110 = vector.broadcast %cst_51 : f32 to vector<32x128xf32>
    %111 = arith.maximumf %109, %110 : vector<32x128xf32>
    %c160 = arith.constant 160 : index
    %c0_52 = arith.constant 0 : index
    %112 = vector.load %arg3[%c160, %c0_52] : memref<192x128xbf16, #tpu.memory_space<vmem>>, vector<24x32xbf16>
    %113 = arith.truncf %111 : vector<32x128xf32> to vector<32x128xbf16>
    %cst_53 = arith.constant dense<0.000000e+00> : vector<24x128xf32>
    %114 = tpu.matmul %112, %113, %cst_53 {dimension_numbers = #tpu.dot_dimension_numbers<[1], [0], [0], [1], [0, 0, 1, 1], [], []>} : vector<24x32xbf16>, vector<32x128xbf16>, vector<24x128xf32> -> vector<24x128xf32>
    %115 = vector.extract_strided_slice %114 {offsets = [0, 0], sizes = [8, 128], strides = [1, 1]} : vector<24x128xf32> to vector<8x128xf32>
    %116 = vector.extract_strided_slice %114 {offsets = [8, 0], sizes = [8, 128], strides = [1, 1]} : vector<24x128xf32> to vector<8x128xf32>
    %117 = vector.extract_strided_slice %114 {offsets = [16, 0], sizes = [8, 128], strides = [1, 1]} : vector<24x128xf32> to vector<8x128xf32>
    %c1_i32_54 = arith.constant 1 : i32
    %118 = tpu.dynamic_rotate %115 by %c1_i32_54 dim 1 : vector<8x128xf32>, i32 -> vector<8x128xf32>
    %c127_i32_55 = arith.constant 127 : i32
    %119 = tpu.dynamic_rotate %117 by %c127_i32_55 dim 1 : vector<8x128xf32>, i32 -> vector<8x128xf32>
    %cst_56 = arith.constant 0.000000e+00 : f32
    %120 = vector.shape_cast %20 : vector<1x128xi1> to vector<1x128xi1>
    %121 = vector.broadcast %120 : vector<1x128xi1> to vector<8x128xi1>
    %122 = vector.broadcast %cst_56 : f32 to vector<8x128xf32>
    %123 = arith.select %121, %118, %122 : vector<8x128xi1>, vector<8x128xf32>
    %124 = arith.addf %116, %123 : vector<8x128xf32>
    %cst_57 = arith.constant 0.000000e+00 : f32
    %125 = vector.shape_cast %22 : vector<1x128xi1> to vector<1x128xi1>
    %126 = vector.broadcast %125 : vector<1x128xi1> to vector<8x128xi1>
    %127 = vector.broadcast %cst_57 : f32 to vector<8x128xf32>
    %128 = arith.select %126, %119, %127 : vector<8x128xi1>, vector<8x128xf32>
    %129 = arith.addf %124, %128 : vector<8x128xf32>
    %c32_58 = arith.constant 32 : index
    %c0_59 = arith.constant 0 : index
    %130 = vector.load %arg4[%c32_58, %c0_59] : memref<40x128xf32, #tpu.memory_space<vmem>>, vector<8x128xf32>
    tpu.vector_store %arg4[%c32_58, %c0_59], %129 {strides = array<i32>} : memref<40x128xf32, #tpu.memory_space<vmem>>, vector<8x128xf32>,
    return
  }
  func.func @transform_0(%arg0: i32) -> (i32, i32) {
    %c0_i32 = arith.constant 0 : i32
    %c0_i32_0 = arith.constant 0 : i32
    return %c0_i32, %arg0 : i32, i32
  }
  func.func @transform_1(%arg0: i32) -> (i32, i32) {
    %c0_i32 = arith.constant 0 : i32
    %c0_i32_0 = arith.constant 0 : i32
    %c0_i32_1 = arith.constant 0 : i32
    return %c0_i32, %c0_i32_0 : i32, i32
  }
  func.func @transform_2(%arg0: i32) -> (i32, i32) {
    %c0_i32 = arith.constant 0 : i32
    %c0_i32_0 = arith.constant 0 : i32
    %c0_i32_1 = arith.constant 0 : i32
    return %c0_i32, %c0_i32_0 : i32, i32
  }
  func.func @transform_3(%arg0: i32) -> (i32, i32) {
    %c0_i32 = arith.constant 0 : i32
    %c0_i32_0 = arith.constant 0 : i32
    return %c0_i32, %arg0 : i32, i32
  }
}

</mosaic_0001>

<llo_original>
// kernel: tpu_custom_call.1
$region0: #{tpu_custom_call.1}
  #allocation0 [shape = 'u32[]', space=smem, size = 0x4, offset = 0x4, fixed_abs, tag = 'smem constant byte address 0x4 - core index']
  #allocation1 [shape = 'u32[144,128]{1,0:T(1,128)}', space=vmem, size = 0x12000, scoped, tag = 'internal scratch']
  %s0 = inlined_call_operand.vmem [shape: f32[16,256], index: 0, kind: input, shape index: {}]
  %s1 = inlined_call_operand.vmem [shape: f32[240,1], index: 1, kind: input, shape index: {}]
  %s2 = inlined_call_operand.vmem [shape: bf16[192,128], index: 2, kind: input, shape index: {}]
  %s3 = inlined_call_operand.hbm [shape: f32[40,256], index: 3, kind: output, shape index: {}]
  %s4 = sld [smem:[#allocation0]]
  $region83: #{tpu_custom_call.1} parent=0
    _
  %s6 = ssub.s32 1, %s4
  %s7 = scalar_select 0, %s6, %s4
  $region1: #{tpu_custom_call.1} parent=0
    #allocation2 [shape = 'u8[16384]{0}', space=vmem, size = 0x4000, scoped, tag = 'input window, operand 0']
    #allocation3 [shape = 'u8[40960]{0}', space=vmem, size = 0xa000, scoped, tag = 'output window, operand 0']
    #allocation4 [shape = 's32[2]{0}', space=sflag, size = 0x8, scoped, tag = 'scoped memory for tpu_custom_call.1']
    %8 = vsyncpa [#allocation4], 0
    %s9 = scalar_lea.sflag [#allocation4], 1
    %10 = vsyncpa %s9, 0
    loop: start=0, step=1, limit=4
    $region2: #{tpu_custom_call.1} parent=1 // loop_pre_header
      _
    $region3: #{tpu_custom_call.1} parent=1 // loop_header
      %s12 = sphi 0, %s16
      %p13 = scmp.ge.s32.totalorder %s12, 4
      %s22 = sphi 0, %s24
      %s25 = sphi 0, %s22
      %s26 = sphi 0, %s25
      %s42 = sphi 0, %s26
      %s46 = sphi 0, %s46
      %s48 = sphi 0, %s46
      %s49 = sphi 0, %s48
      %s63 = sphi 0, %s49
      %s67 = sphi 0, %s67
      %s69 = sphi 0, %s67
      %s70 = sphi 0, %s69
      %s84 = sphi 0, %s70
      %s90 = sphi 0, %s92
      %s93 = sphi 0, %s90
      %s94 = sphi 0, %s93
      %s110 = sphi 0, %s94
    $region4: #{tpu_custom_call.1} parent=1 // loop_header_branch
      %15 = sbr.rel (%p13) target = $region8
    $region5: #{tpu_custom_call.1} parent=1 // loop_body
      %s17 = ssub.s32 %s12, 1
      %s18 = ssub.s32 %s12, 2
      %s19 = sadd.s32 %s12, 1
      %s20 = ssub.s32 %s12, %s19
      %p21 = scmp.eq.s32.totalorder %s20, 0
      %s23 = sadd.s32 %s22, 1
      %s24 = scalar_select %p21, %s22, %s23
      %p27 = pneg %p21
      %p28 = scmp.eq.s32.totalorder %s12, 1
      %p29 = por %p27, %p28
      %p30 = scmp.ne.s32.totalorder %s22, %s25
      %p31 = scmp.eq.s32.totalorder %s12, 0
      %p32 = por %p30, %p31
      %p33 = scmp.ne.s32.totalorder %s22, %s25
      %p34 = scmp.eq.s32.totalorder %s17, 1
      %p35 = por %p33, %p34
      %p36 = scmp.ne.s32.totalorder %s25, %s26
      %p37 = scmp.eq.s32.totalorder %s17, 0
      %p38 = por %p36, %p37
      %p39 = scmp.ne.s32.totalorder %s25, %s26
      %p40 = scmp.eq.s32.totalorder %s18, 1
      %p41 = por %p39, %p40
      %p43 = scmp.ne.s32.totalorder %s26, %s42
      %p44 = scmp.eq.s32.totalorder %s18, 0
      %p45 = por %p43, %p44
      %s47 = sadd.s32 %s46, 1
      %p50 = scmp.eq.s32.totalorder %s12, 1
      %p51 = scmp.ne.s32.totalorder %s46, %s48
      %p52 = scmp.eq.s32.totalorder %s12, 0
      %p53 = por %p51, %p52
      %p54 = scmp.ne.s32.totalorder %s46, %s48
      %p55 = scmp.eq.s32.totalorder %s17, 1
      %p56 = por %p54, %p55
      %p57 = scmp.ne.s32.totalorder %s48, %s49
      %p58 = scmp.eq.s32.totalorder %s17, 0
      %p59 = por %p57, %p58
      %p60 = scmp.ne.s32.totalorder %s48, %s49
      %p61 = scmp.eq.s32.totalorder %s18, 1
      %p62 = por %p60, %p61
      %p64 = scmp.ne.s32.totalorder %s49, %s63
      %p65 = scmp.eq.s32.totalorder %s18, 0
      %p66 = por %p64, %p65
      %s68 = sadd.s32 %s67, 1
      %p71 = scmp.eq.s32.totalorder %s12, 1
      %p72 = scmp.ne.s32.totalorder %s67, %s69
      %p73 = scmp.eq.s32.totalorder %s12, 0
      %p74 = por %p72, %p73
      %p75 = scmp.ne.s32.totalorder %s67, %s69
      %p76 = scmp.eq.s32.totalorder %s17, 1
      %p77 = por %p75, %p76
      %p78 = scmp.ne.s32.totalorder %s69, %s70
      %p79 = scmp.eq.s32.totalorder %s17, 0
      %p80 = por %p78, %p79
      %p81 = scmp.ne.s32.totalorder %s69, %s70
      %p82 = scmp.eq.s32.totalorder %s18, 1
      %p83 = por %p81, %p82
      %p85 = scmp.ne.s32.totalorder %s70, %s84
      %p86 = scmp.eq.s32.totalorder %s18, 0
      %p87 = por %p85, %p86
      %s88 = ssub.s32 %s12, %s19
      %p89 = scmp.eq.s32.totalorder %s88, 0
      %s91 = sadd.s32 %s90, 1
      %s92 = scalar_select %p89, %s90, %s91
      %p95 = pneg %p89
      %p96 = scmp.eq.s32.totalorder %s12, 1
      %p97 = por %p95, %p96
      %p98 = scmp.ne.s32.totalorder %s90, %s93
      %p99 = scmp.eq.s32.totalorder %s12, 0
      %p100 = por %p98, %p99
      %p101 = scmp.ne.s32.totalorder %s90, %s93
      %p102 = scmp.eq.s32.totalorder %s17, 1
      %p103 = por %p101, %p102
      %p104 = scmp.ne.s32.totalorder %s93, %s94
      %p105 = scmp.eq.s32.totalorder %s17, 0
      %p106 = por %p104, %p105
      %p107 = scmp.ne.s32.totalorder %s93, %s94
      %p108 = scmp.eq.s32.totalorder %s18, 1
      %p109 = por %p107, %p108
      %p111 = scmp.ne.s32.totalorder %s94, %s110
      %p112 = scmp.eq.s32.totalorder %s18, 0
      %p113 = por %p111, %p112
      %p114 = scmp.le.s32.totalorder 1, %s12
      %p115 = scmp.lt.s32.totalorder %s12, 3
      %p116 = pnand %p114, %p115
      %p117 = pneg %p116
      // Predicated region
      $region9: #{tpu_custom_call.1} parent=5 // pred_check
        _
      $region10: #{tpu_custom_call.1} parent=5 // pred_check_branch
        %119 = sbr.rel (%p116) target = $region12
      $region11: #{tpu_custom_call.1} parent=5 // pred_region
        %s120 = ssub.s32 %s12, 1
        // Predicated region
        $region13: #{tpu_custom_call.1} parent=11 // pred_check
          %p121 = pneg %p59
        $region14: #{tpu_custom_call.1} parent=11 // pred_check_branch
          %123 = sbr.rel (%p121) target = $region16
        $region15: #{tpu_custom_call.1} parent=11 // pred_region
          _
        $region16: #{tpu_custom_call.1} parent=11 // pred_fallthru
          _
        // Predicated region
        $region17: #{tpu_custom_call.1} parent=11 // pred_check
          %p124 = pneg %p80
        $region18: #{tpu_custom_call.1} parent=11 // pred_check_branch
          %126 = sbr.rel (%p124) target = $region20
        $region19: #{tpu_custom_call.1} parent=11 // pred_region
          _
        $region20: #{tpu_custom_call.1} parent=11 // pred_fallthru
          _
      $region12: #{tpu_custom_call.1} parent=5 // pred_fallthru
        _
      %p127 = scmp.lt.s32.totalorder %s12, 2
      // Predicated region
      $region21: #{tpu_custom_call.1} parent=5 // pred_check
        %p128 = pneg %p127
      $region22: #{tpu_custom_call.1} parent=5 // pred_check_branch
        %130 = sbr.rel (%p128) target = $region24
      $region23: #{tpu_custom_call.1} parent=5 // pred_region
        // Predicated region
        $region25: #{tpu_custom_call.1} parent=23 // pred_check
          %p131 = pneg %p32
        $region26: #{tpu_custom_call.1} parent=23 // pred_check_branch
          %133 = sbr.rel (%p131) target = $region28
        $region27: #{tpu_custom_call.1} parent=23 // pred_region
          %s134 = sand.u32 %s22, 1
          %s135 = sand.u32 %s22, 1
          %s136 = smul.addr %s135, 16
          %s137 = scalar_lea.vmem [#allocation2], %s136
          %s138 = smul.addr %s12, 8
          %s139 = scalar_lea.vmem %s0, %s138
          // Predicated region
          $region29: #{tpu_custom_call.1} parent=27 // pred_check
            _
          $region30: #{tpu_custom_call.1} parent=27 // pred_check_branch
            %141 = sbr.rel (0) target = $region32
          $region31: #{tpu_custom_call.1} parent=27 // pred_region
            // Predicated region
            $region33: #{tpu_custom_call.1} parent=31 // pred_check
              _
            $region34: #{tpu_custom_call.1} parent=31 // pred_check_branch
              %143 = sbr.rel (0) target = $region36
            $region35: #{tpu_custom_call.1} parent=31 // pred_region
              // Predicated region
              $region48: #{tpu_custom_call.1} parent=35 // pred_check
                _
              $region49: #{tpu_custom_call.1} parent=35 // pred_check_branch
                %161 = sbr.rel (0) target = $region51
              $region50: #{tpu_custom_call.1} parent=35 // pred_region
                loop: start=0, step=1, limit=1
                $region52: #{tpu_custom_call.1} parent=50 // loop_pre_header
                  _
                $region53: #{tpu_custom_call.1} parent=50 // loop_header
                  %s163 = sphi 0, %s167
                  %p164 = scmp.ge.s32.totalorder %s163, 1
                  %s168 = sphi %s139, %s139
                  %s169 = sphi %s137, %s137
                $region54: #{tpu_custom_call.1} parent=50 // loop_header_branch
                  %166 = sbr.rel (%p164) target = $region58
                $region55: #{tpu_custom_call.1} parent=50 // loop_body
                  %v170 = vld [vmem:[%s168] sm:$0xff]
                  %171 = vst [vmem:[%s169] sm:$0xff] %v170
                  %v172 = vld [vmem:[%s168 + $0x10] sm:$0xff]
                  %173 = vst [vmem:[%s169 + $0x8] sm:$0xff] %v172
                $region56: #{tpu_custom_call.1} parent=50 // loop_footer
                  %s167 = sadd.s32 1, %s163
                $region57: #{tpu_custom_call.1} parent=50 // loop_footer_branch
                  %162 = sbr.rel target = $region53
                $region58: #{tpu_custom_call.1} parent=50 // loop_exit
                  _
              $region51: #{tpu_custom_call.1} parent=35 // pred_fallthru
                _
              // Predicated region
              $region59: #{tpu_custom_call.1} parent=35 // pred_check
                _
              $region60: #{tpu_custom_call.1} parent=35 // pred_check_branch
                %175 = sbr.rel target = $region62
              $region61: #{tpu_custom_call.1} parent=35 // pred_region
                _
              $region62: #{tpu_custom_call.1} parent=35 // pred_fallthru
                _
            $region36: #{tpu_custom_call.1} parent=31 // pred_fallthru
              _
            // Predicated region
            $region37: #{tpu_custom_call.1} parent=31 // pred_check
              _
            $region38: #{tpu_custom_call.1} parent=31 // pred_check_branch
              %145 = sbr.rel target = $region40
            $region39: #{tpu_custom_call.1} parent=31 // pred_region
              %s147 = ssub.s32 256, 1
              loop: start=0, step=1, limit=1
              $region41: #{tpu_custom_call.1} parent=39 // loop_pre_header
                _
              $region42: #{tpu_custom_call.1} parent=39 // loop_header
                %s149 = sphi 0, %s153
                %p150 = scmp.ge.s32.totalorder %s149, 1
                %s154 = sphi %s139, %s139
                %s155 = sphi %s137, %s137
              $region43: #{tpu_custom_call.1} parent=39 // loop_header_branch
                %152 = sbr.rel (%p150) target = $region47
              $region44: #{tpu_custom_call.1} parent=39 // loop_body
                %v156 = vld [vmem:[%s154] sm:%s147]
                %157 = vst [vmem:[%s155] sm:%s147] %v156
                %v158 = vld [vmem:[%s154 + $0x10] sm:%s147]
                %159 = vst [vmem:[%s155 + $0x8] sm:%s147] %v158
              $region45: #{tpu_custom_call.1} parent=39 // loop_footer
                %s153 = sadd.s32 1, %s149
              $region46: #{tpu_custom_call.1} parent=39 // loop_footer_branch
                %148 = sbr.rel target = $region42
              $region47: #{tpu_custom_call.1} parent=39 // loop_exit
                _
            $region40: #{tpu_custom_call.1} parent=31 // pred_fallthru
              _
          $region32: #{tpu_custom_call.1} parent=27 // pred_fallthru
            _
          %176 = vnop
        $region28: #{tpu_custom_call.1} parent=23 // pred_fallthru
          _
      $region24: #{tpu_custom_call.1} parent=5 // pred_fallthru
        _
      %p177 = scmp.le.s32.totalorder 1, %s12
      %p178 = scmp.lt.s32.totalorder %s12, 3
      %p179 = pnand %p177, %p178
      %p180 = pneg %p179
      // Predicated region
      $region63: #{tpu_custom_call.1} parent=5 // pred_check
        _
      $region64: #{tpu_custom_call.1} parent=5 // pred_check_branch
        %182 = sbr.rel (%p179) target = $region66
      $region65: #{tpu_custom_call.1} parent=5 // pred_region
        %s183 = ssub.s32 %s12, 1
        %s184 = sand.u32 %s25, 1
        %s185 = sand.u32 %s25, 1
        %s186 = smul.addr %s185, 16
        %s187 = scalar_lea.vmem [#allocation2], %s186
        // Predicated region
        $region67: #{tpu_custom_call.1} parent=65 // pred_check
          %p188 = pneg %p38
        $region68: #{tpu_custom_call.1} parent=65 // pred_check_branch
          %190 = sbr.rel (%p188) target = $region70
        $region69: #{tpu_custom_call.1} parent=65 // pred_region
          _
        $region70: #{tpu_custom_call.1} parent=65 // pred_fallthru
          _
        %s191 = sand.u32 %s25, 1
        %s192 = sand.u32 %s25, 1
        %s193 = smul.addr %s192, 16
        %s194 = scalar_lea.vmem [#allocation2], %s193
        %p195 = pneg %p38
        %p196 = pneg %p35
        %p197 = pneg %p59
        %p198 = pneg %p56
        %p199 = pneg %p80
        %p200 = pneg %p77
        %p201 = pneg %p106
        %p202 = pneg %p103
        %s203 = sand.u32 %s93, 1
        %s204 = scalar_lea.sflag [#allocation4], %s203
        %s205 = sand.u32 %s93, 1
        %s206 = smul.addr %s205, 40
        %s207 = scalar_lea.vmem [#allocation3], %s206
        %v209 = vld [vmem:[%s187] sm:$0xff]
        %v210 = vld [vmem:[%s187 + $0x8] sm:$0xff]
        %211 = vst [vmem:[%s207] sm:$0xff] %v209
        %212 = vst [vmem:[%s207 + $0x8] sm:$0xff] %v210
        %v213 = vlaneseq
        %v214 = vand.u32 %v213, 127
        %vm215 = vcmp.lt.s32.totalorder %v214, 0
        %v216 = vsub.s32 0, %v214
        %v217 = vsel %vm215, %v216, %v214
        %v218 = vshrl.u32 %v217, 7
        %v219 = vand.u32 %v217, 127
        %v220 = vsub.s32 0, %v219
        %v221 = vsel %vm215, %v220, %v219
        %vm222 = vcmp.ne.s32.totalorder %v221, 0
        %vm223 = vcmp.lt.s32.totalorder %v221, 0
        %vm224 = vmand %vm223, %vm222
        %v225 = vadd.s32 %v221, 128
        %v226 = vsel %vm224, %v225, %v221
        %vm227 = vcmp.ne.s32.totalorder %v226, 0
        %vm228 = vcmp.ne.s32.totalorder %v226, 127
        %v229 = vld [vmem:[%s207] sm:$0xff]
        %v230 = vld [vmem:[%s207 + $0x8] sm:$0xff]
        %v231 = vld [vmem:[%s1] sm:$0xff]
        %v232 = vld [vmem:[%s1 + $0x8] sm:$0xff]
        %v233 = vld [vmem:[%s1 + $0x10] sm:$0xff]
        %v234 = vld [vmem:[%s1 + $0x18] sm:$0xff]
        %v235 = vld [vmem:[%s1 + $0x20] sm:$0xff]
        %v236 = vld [vmem:[%s1 + $0x28] sm:$0xff]
        %v237 = vld [vmem:[%s1 + $0x30] sm:$0xff]
        %v238 = vld [vmem:[%s1 + $0x38] sm:$0xff]
        %240 = vset.pattern.permute.xlu0 0
        %241 = vperm.xlu0 %240, %v231
        %v242 = vpop.permute.xlu0 %241
        %245 = vset.pattern.permute.xlu0 0
        %246 = vperm.xlu0 %245, %v232
        %v247 = vpop.permute.xlu0 %246
        %v249 = vmul.f32 %v229, %v242
        %v250 = vmul.f32 %v230, %v247
        %252 = vset.pattern.permute.xlu0 0
        %253 = vperm.xlu0 %252, %v233
        %v254 = vpop.permute.xlu0 %253
        %257 = vset.pattern.permute.xlu0 0
        %258 = vperm.xlu0 %257, %v234
        %v259 = vpop.permute.xlu0 %258
        %v261 = vadd.f32 %v249, %v254
        %v262 = vadd.f32 %v250, %v259
        %v263 = vmax.f32 %v261, 0.0
        %v264 = vmax.f32 %v262, 0.0
        %v265 = vld [vmem:[%s2] sm:$0xf]
        %v266 = vld [vmem:[%s2 + $0x4] sm:$0xf]
        %v267 = vld [vmem:[%s2 + $0x8] sm:$0xf]
        %v268 = vld [vmem:[%s2 + $0xc] sm:$0xf]
        %v269 = vpack.c.bf16 %v264, %v263
        %271 = vset.pattern.permute.xlu0 0
        %272 = vperm.xlu0 %271, %v235
        %v273 = vpop.permute.xlu0 %272
        %276 = vset.pattern.permute.xlu0 0
        %277 = vperm.xlu0 %276, %v236
        %v278 = vpop.permute.xlu0 %277
        %281 = vset.pattern.permute.xlu0 0
        %282 = vperm.xlu0 %281, %v237
        %v283 = vpop.permute.xlu0 %282
        %286 = vset.pattern.permute.xlu0 0
        %287 = vperm.xlu0 %286, %v238
        %v288 = vpop.permute.xlu0 %287
        %v294 = vunpack.c.l.b16 %v265
        %v295 = vunpack.c.l.b16 %v266
        %v296 = vunpack.c.l.b16 %v267
        %v297 = vunpack.c.l.b16 %v268
        %v298 = vpack.c.b16 %v295, %v294
        %v299 = vpack.c.b16 %v297, %v296
        %vm300 = vcmask 130048
        %v302 = vsel %vm300, %v298, 0
        %v305 = vsel %vm300, %v299, 0
        %307 = vmatprep.subr.bf16.mxu0 0
        %308 = vmatpush1.bf16.msra.mxu0 0
        %309 = vmatprep.subr.bf16.mxu0 0
        %310 = vmatpush1.bf16.msra.mxu0 0
        %311 = vmatprep.subr.bf16.mxu0 0
        %312 = vmatpush1.bf16.msra.mxu0 0
        %313 = vmatprep.subr.bf16.mxu0 0
        %314 = vmatpush1.bf16.msra.mxu0 0
        %315 = vmatprep.subr.bf16.mxu0 0
        %316 = vmatpush1.bf16.msra.mxu0 0
        %317 = vmatprep.subr.bf16.mxu0 0
        %318 = vmatpush1.bf16.msra.mxu0 0
        %319 = vmatprep.subr.bf16.mxu0 0
        %320 = vmatpush1.bf16.msra.mxu0 0
        %321 = vmatprep.subr.bf16.mxu0 0
        %322 = vmatpush1.bf16.msra.mxu0 %v269
        %323 = vmatprep.subr.bf16.mxu0 0
        %324 = vmatpush2.bf16.msra.mxu0 0
        %325 = vmatprep.subr.bf16.mxu0 0
        %326 = vmatpush2.bf16.msra.mxu0 0
        %327 = vmatprep.subr.bf16.mxu0 0
        %328 = vmatpush2.bf16.msra.mxu0 0
        %329 = vmatprep.subr.bf16.mxu0 0
        %330 = vmatpush2.bf16.msra.mxu0 0
        %331 = vmatprep.subr.bf16.mxu0 0
        %332 = vmatpush2.bf16.msra.mxu0 0
        %333 = vmatprep.subr.bf16.mxu0 0
        %334 = vmatpush2.bf16.msra.mxu0 0
        %335 = vmatprep.subr.bf16.mxu0 0
        %336 = vmatpush2.bf16.msra.mxu0 0
        %337 = vmatprep.subr.bf16.mxu0 0
        %338 = vmatpush2.bf16.msra.mxu0 0
        %339 = vmatprep.mubr.bf16.mxu0 0
        %340 = vmatmul.mubr.bf16.gmra.mxu0 %v302
        %v341 = vpop.f32.mrf.mxu0
        %v342 = vadd.f32 %v273, %v341
        %v343 = vpop.f32.mrf.mxu0
        %v344 = vpop.f32.mrf.mxu0
        %v345 = vadd.f32 %v278, %v344
        %v346 = vpop.f32.mrf.mxu0
        %347 = vmatprep.mubr.bf16.mxu0 0
        %348 = vmatmul.mubr.bf16.gmra.mxu0 %v305
        %v349 = vpop.f32.mrf.mxu0
        %v350 = vadd.f32 %v283, %v349
        %v351 = vpop.f32.mrf.mxu0
        %v352 = vpop.f32.mrf.mxu0
        %v353 = vadd.f32 %v288, %v352
        %v354 = vpop.f32.mrf.mxu0
        %355 = vdwg.mxu0
        %v356 = vmax.f32 %v342, 0.0
        %v357 = vmax.f32 %v345, 0.0
        %v358 = vmax.f32 %v350, 0.0
        %v359 = vmax.f32 %v353, 0.0
        %v360 = vld [vmem:[%s2 + $0x10] sm:$0xf]
        %v361 = vld [vmem:[%s2 + $0x14] sm:$0xf]
        %v362 = vld [vmem:[%s2 + $0x18] sm:$0xf]
        %v363 = vpack.c.bf16 %v357, %v356
        %v364 = vpack.c.bf16 %v359, %v358
        %v368 = vunpack.c.l.b16 %v360
        %v369 = vunpack.c.l.b16 %v361
        %v370 = vunpack.c.l.b16 %v362
        %v371 = vpack.c.b16 %v369, %v368
        %v372 = vpack.c.b16 %v370, %v370
        %vm373 = vcmask 261120
        %v375 = vsel %vm373, %v371, 0
        %v378 = vsel %vm373, %v372, 0
        %380 = vmatprep.subr.bf16.mxu0 0
        %381 = vmatpush1.bf16.msra.mxu0 0
        %382 = vmatprep.subr.bf16.mxu0 0
        %383 = vmatpush1.bf16.msra.mxu0 0
        %384 = vmatprep.subr.bf16.mxu0 0
        %385 = vmatpush1.bf16.msra.mxu0 0
        %386 = vmatprep.subr.bf16.mxu0 0
        %387 = vmatpush1.bf16.msra.mxu0 0
        %388 = vmatprep.subr.bf16.mxu0 0
        %389 = vmatpush1.bf16.msra.mxu0 0
        %390 = vmatprep.subr.bf16.mxu0 0
        %391 = vmatpush1.bf16.msra.mxu0 0
        %392 = vmatprep.subr.bf16.mxu0 0
        %393 = vmatpush1.bf16.msra.mxu0 %v364
        %394 = vmatprep.subr.bf16.mxu0 0
        %395 = vmatpush1.bf16.msra.mxu0 %v363
        %396 = vmatprep.subr.bf16.mxu0 0
        %397 = vmatpush2.bf16.msra.mxu0 0
        %398 = vmatprep.subr.bf16.mxu0 0
        %399 = vmatpush2.bf16.msra.mxu0 0
        %400 = vmatprep.subr.bf16.mxu0 0
        %401 = vmatpush2.bf16.msra.mxu0 0
        %402 = vmatprep.subr.bf16.mxu0 0
        %403 = vmatpush2.bf16.msra.mxu0 0
        %404 = vmatprep.subr.bf16.mxu0 0
        %405 = vmatpush2.bf16.msra.mxu0 0
        %406 = vmatprep.subr.bf16.mxu0 0
        %407 = vmatpush2.bf16.msra.mxu0 0
        %408 = vmatprep.subr.bf16.mxu0 0
        %409 = vmatpush2.bf16.msra.mxu0 0
        %410 = vmatprep.subr.bf16.mxu0 0
        %411 = vmatpush2.bf16.msra.mxu0 0
        %412 = vmatprep.mubr.bf16.mxu0 0
        %413 = vmatmul.mubr.bf16.gmra.mxu0 %v375
        %v414 = vpop.f32.mrf.mxu0
        %v415 = vadd.f32 0.0, %v414
        %v416 = vpop.f32.mrf.mxu0
        %v417 = vpop.f32.mrf.mxu0
        %v418 = vadd.f32 0.0, %v417
        %v419 = vpop.f32.mrf.mxu0
        %420 = vmatprep.mubr.bf16.mxu0 0
        %421 = vmatmul.mubr.bf16.gmra.mxu0 %v378
        %v422 = vpop.f32.mrf.mxu0
        %v423 = vadd.f32 0.0, %v422
        %v424 = vpop.f32.mrf.mxu0
        %v425 = vpop.f32.mrf.mxu0
        %v426 = vpop.f32.mrf.mxu0
        %427 = vdwg.mxu0
        %428 = vrot.lane.b32.xlu0 %v415, 1
        %v429 = vpop.permute.xlu0 %428
        %430 = vrot.lane.b32.xlu0 %v423, 127
        %v431 = vpop.permute.xlu0 %430
        %v432 = vsel %vm227, 1, 0
        %vm433 = vcmp.eq.s32.totalorder %v432, 1
        %v434 = vsel %vm433, %v429, 0.0
        %v435 = vadd.f32 %v418, %v434
        %v436 = vsel %vm228, 1, 0
        %vm437 = vcmp.eq.s32.totalorder %v436, 1
        %v438 = vsel %vm437, %v431, 0.0
        %v439 = vadd.f32 %v435, %v438
        %440 = vst [vmem:[%s207 + $0x10] sm:$0xff] %v439
        %v441 = vld [vmem:[%s207] sm:$0xff]
        %v442 = vld [vmem:[%s207 + $0x8] sm:$0xff]
        %v443 = vld [vmem:[%s207 + $0x10] sm:$0xff]
        %v444 = vld [vmem:[%s1 + $0x40] sm:$0xff]
        %v445 = vld [vmem:[%s1 + $0x48] sm:$0xff]
        %v446 = vld [vmem:[%s1 + $0x50] sm:$0xff]
        %v447 = vld [vmem:[%s1 + $0x58] sm:$0xff]
        %v448 = vld [vmem:[%s1 + $0x60] sm:$0xff]
        %v449 = vld [vmem:[%s1 + $0x68] sm:$0xff]
        %v450 = vld [vmem:[%s1 + $0x70] sm:$0xff]
        %v451 = vld [vmem:[%s1 + $0x78] sm:$0xff]
        %v452 = vld [vmem:[%s1 + $0x80] sm:$0xff]
        %v453 = vld [vmem:[%s1 + $0x88] sm:$0xff]
        %455 = vset.pattern.permute.xlu0 0
        %456 = vperm.xlu0 %455, %v444
        %v457 = vpop.permute.xlu0 %456
        %460 = vset.pattern.permute.xlu0 0
        %461 = vperm.xlu0 %460, %v445
        %v462 = vpop.permute.xlu0 %461
        %465 = vset.pattern.permute.xlu0 0
        %466 = vperm.xlu0 %465, %v446
        %v467 = vpop.permute.xlu0 %466
        %v469 = vmul.f32 %v441, %v457
        %v470 = vmul.f32 %v442, %v462
        %v471 = vmul.f32 %v443, %v467
        %473 = vset.pattern.permute.xlu0 0
        %474 = vperm.xlu0 %473, %v447
        %v475 = vpop.permute.xlu0 %474
        %478 = vset.pattern.permute.xlu0 0
        %479 = vperm.xlu0 %478, %v448
        %v480 = vpop.permute.xlu0 %479
        %483 = vset.pattern.permute.xlu0 0
        %484 = vperm.xlu0 %483, %v449
        %v485 = vpop.permute.xlu0 %484
        %v487 = vadd.f32 %v469, %v475
        %v488 = vadd.f32 %v470, %v480
        %v489 = vadd.f32 %v471, %v485
        %v490 = vmax.f32 %v487, 0.0
        %v491 = vmax.f32 %v488, 0.0
        %v492 = vmax.f32 %v489, 0.0
        %v493 = vld [vmem:[%s2 + $0x20] sm:$0xf]
        %v494 = vld [vmem:[%s2 + $0x24] sm:$0xf]
        %v495 = vld [vmem:[%s2 + $0x28] sm:$0xf]
        %v496 = vld [vmem:[%s2 + $0x2c] sm:$0xf]
        %v497 = vpack.c.bf16 %v491, %v490
        %v498 = vpack.c.bf16 %v492, %v492
        %500 = vset.pattern.permute.xlu0 0
        %501 = vperm.xlu0 %500, %v450
        %v502 = vpop.permute.xlu0 %501
        %505 = vset.pattern.permute.xlu0 0
        %506 = vperm.xlu0 %505, %v451
        %v507 = vpop.permute.xlu0 %506
        %510 = vset.pattern.permute.xlu0 0
        %511 = vperm.xlu0 %510, %v452
        %v512 = vpop.permute.xlu0 %511
        %515 = vset.pattern.permute.xlu0 0
        %516 = vperm.xlu0 %515, %v453
        %v517 = vpop.permute.xlu0 %516
        %v523 = vunpack.c.l.b16 %v493
        %v524 = vunpack.c.l.b16 %v494
        %v525 = vunpack.c.l.b16 %v495
        %v526 = vunpack.c.l.b16 %v496
        %v527 = vpack.c.b16 %v524, %v523
        %v528 = vpack.c.b16 %v526, %v525
        %vm529 = vcmask 195584
        %v531 = vsel %vm529, %v527, 0
        %v534 = vsel %vm529, %v528, 0
        %vm536 = vcmask 1043456
        %v538 = vsel %vm536, %v498, 0
        %540 = vmatprep.subr.bf16.mxu0 0
        %541 = vmatpush1.bf16.msra.mxu0 0
        %542 = vmatprep.subr.bf16.mxu0 0
        %543 = vmatpush1.bf16.msra.mxu0 0
        %544 = vmatprep.subr.bf16.mxu0 0
        %545 = vmatpush1.bf16.msra.mxu0 0
        %546 = vmatprep.subr.bf16.mxu0 0
        %547 = vmatpush1.bf16.msra.mxu0 0
        %548 = vmatprep.subr.bf16.mxu0 0
        %549 = vmatpush1.bf16.msra.mxu0 0
        %550 = vmatprep.subr.bf16.mxu0 0
        %551 = vmatpush1.bf16.msra.mxu0 0
        %552 = vmatprep.subr.bf16.mxu0 0
        %553 = vmatpush1.bf16.msra.mxu0 %v538
        %554 = vmatprep.subr.bf16.mxu0 0
        %555 = vmatpush1.bf16.msra.mxu0 %v497
        %556 = vmatprep.subr.bf16.mxu0 0
        %557 = vmatpush2.bf16.msra.mxu0 0
        %558 = vmatprep.subr.bf16.mxu0 0
        %559 = vmatpush2.bf16.msra.mxu0 0
        %560 = vmatprep.subr.bf16.mxu0 0
        %561 = vmatpush2.bf16.msra.mxu0 0
        %562 = vmatprep.subr.bf16.mxu0 0
        %563 = vmatpush2.bf16.msra.mxu0 0
        %564 = vmatprep.subr.bf16.mxu0 0
        %565 = vmatpush2.bf16.msra.mxu0 0
        %566 = vmatprep.subr.bf16.mxu0 0
        %567 = vmatpush2.bf16.msra.mxu0 0
        %568 = vmatprep.subr.bf16.mxu0 0
        %569 = vmatpush2.bf16.msra.mxu0 0
        %570 = vmatprep.subr.bf16.mxu0 0
        %571 = vmatpush2.bf16.msra.mxu0 0
        %572 = vmatprep.mubr.bf16.mxu0 0
        %573 = vmatmul.mubr.bf16.gmra.mxu0 %v531
        %v574 = vpop.f32.mrf.mxu0
        %v575 = vadd.f32 %v502, %v574
        %v576 = vpop.f32.mrf.mxu0
        %v577 = vpop.f32.mrf.mxu0
        %v578 = vadd.f32 %v507, %v577
        %v579 = vpop.f32.mrf.mxu0
        %580 = vmatprep.mubr.bf16.mxu0 0
        %581 = vmatmul.mubr.bf16.gmra.mxu0 %v534
        %v582 = vpop.f32.mrf.mxu0
        %v583 = vadd.f32 %v512, %v582
        %v584 = vpop.f32.mrf.mxu0
        %v585 = vpop.f32.mrf.mxu0
        %v586 = vadd.f32 %v517, %v585
        %v587 = vpop.f32.mrf.mxu0
        %588 = vdwg.mxu0
        %v589 = vmax.f32 %v575, 0.0
        %v590 = vmax.f32 %v578, 0.0
        %v591 = vmax.f32 %v583, 0.0
        %v592 = vmax.f32 %v586, 0.0
        %v593 = vld [vmem:[%s2 + $0x30] sm:$0xf]
        %v594 = vld [vmem:[%s2 + $0x34] sm:$0xf]
        %v595 = vld [vmem:[%s2 + $0x38] sm:$0xf]
        %v596 = vpack.c.bf16 %v590, %v589
        %v597 = vpack.c.bf16 %v592, %v591
        %v601 = vunpack.c.l.b16 %v593
        %v602 = vunpack.c.l.b16 %v594
        %v603 = vunpack.c.l.b16 %v595
        %v604 = vpack.c.b16 %v602, %v601
        %v605 = vpack.c.b16 %v603, %v603
        %v607 = vsel %vm373, %v604, 0
        %v610 = vsel %vm373, %v605, 0
        %612 = vmatprep.subr.bf16.mxu0 0
        %613 = vmatpush1.bf16.msra.mxu0 0
        %614 = vmatprep.subr.bf16.mxu0 0
        %615 = vmatpush1.bf16.msra.mxu0 0
        %616 = vmatprep.subr.bf16.mxu0 0
        %617 = vmatpush1.bf16.msra.mxu0 0
        %618 = vmatprep.subr.bf16.mxu0 0
        %619 = vmatpush1.bf16.msra.mxu0 0
        %620 = vmatprep.subr.bf16.mxu0 0
        %621 = vmatpush1.bf16.msra.mxu0 0
        %622 = vmatprep.subr.bf16.mxu0 0
        %623 = vmatpush1.bf16.msra.mxu0 0
        %624 = vmatprep.subr.bf16.mxu0 0
        %625 = vmatpush1.bf16.msra.mxu0 %v597
        %626 = vmatprep.subr.bf16.mxu0 0
        %627 = vmatpush1.bf16.msra.mxu0 %v596
        %628 = vmatprep.subr.bf16.mxu0 0
        %629 = vmatpush2.bf16.msra.mxu0 0
        %630 = vmatprep.subr.bf16.mxu0 0
        %631 = vmatpush2.bf16.msra.mxu0 0
        %632 = vmatprep.subr.bf16.mxu0 0
        %633 = vmatpush2.bf16.msra.mxu0 0
        %634 = vmatprep.subr.bf16.mxu0 0
        %635 = vmatpush2.bf16.msra.mxu0 0
        %636 = vmatprep.subr.bf16.mxu0 0
        %637 = vmatpush2.bf16.msra.mxu0 0
        %638 = vmatprep.subr.bf16.mxu0 0
        %639 = vmatpush2.bf16.msra.mxu0 0
        %640 = vmatprep.subr.bf16.mxu0 0
        %641 = vmatpush2.bf16.msra.mxu0 0
        %642 = vmatprep.subr.bf16.mxu0 0
        %643 = vmatpush2.bf16.msra.mxu0 0
        %644 = vmatprep.mubr.bf16.mxu0 0
        %645 = vmatmul.mubr.bf16.gmra.mxu0 %v607
        %v646 = vpop.f32.mrf.mxu0
        %v647 = vadd.f32 0.0, %v646
        %v648 = vpop.f32.mrf.mxu0
        %v649 = vpop.f32.mrf.mxu0
        %v650 = vadd.f32 0.0, %v649
        %v651 = vpop.f32.mrf.mxu0
        %652 = vmatprep.mubr.bf16.mxu0 0
        %653 = vmatmul.mubr.bf16.gmra.mxu0 %v610
        %v654 = vpop.f32.mrf.mxu0
        %v655 = vadd.f32 0.0, %v654
        %v656 = vpop.f32.mrf.mxu0
        %v657 = vpop.f32.mrf.mxu0
        %v658 = vpop.f32.mrf.mxu0
        %659 = vdwg.mxu0
        %660 = vrot.lane.b32.xlu0 %v647, 1
        %v661 = vpop.permute.xlu0 %660
        %662 = vrot.lane.b32.xlu0 %v655, 127
        %v663 = vpop.permute.xlu0 %662
        %v664 = vsel %vm433, %v661, 0.0
        %v665 = vadd.f32 %v650, %v664
        %v666 = vsel %vm437, %v663, 0.0
        %v667 = vadd.f32 %v665, %v666
        %668 = vst [vmem:[%s207 + $0x18] sm:$0xff] %v667
        %v669 = vld [vmem:[%s207] sm:$0xff]
        %v670 = vld [vmem:[%s207 + $0x8] sm:$0xff]
        %v671 = vld [vmem:[%s207 + $0x10] sm:$0xff]
        %v672 = vld [vmem:[%s207 + $0x18] sm:$0xff]
        %v673 = vld [vmem:[%s1 + $0x90] sm:$0xff]
        %v674 = vld [vmem:[%s1 + $0x98] sm:$0xff]
        %v675 = vld [vmem:[%s1 + $0xa0] sm:$0xff]
        %v676 = vld [vmem:[%s1 + $0xa8] sm:$0xff]
        %v677 = vld [vmem:[%s1 + $0xb0] sm:$0xff]
        %v678 = vld [vmem:[%s1 + $0xb8] sm:$0xff]
        %v679 = vld [vmem:[%s1 + $0xc0] sm:$0xff]
        %v680 = vld [vmem:[%s1 + $0xc8] sm:$0xff]
        %v681 = vld [vmem:[%s1 + $0xd0] sm:$0xff]
        %v682 = vld [vmem:[%s1 + $0xd8] sm:$0xff]
        %v683 = vld [vmem:[%s1 + $0xe0] sm:$0xff]
        %v684 = vld [vmem:[%s1 + $0xe8] sm:$0xff]
        %686 = vset.pattern.permute.xlu0 0
        %687 = vperm.xlu0 %686, %v673
        %v688 = vpop.permute.xlu0 %687
        %691 = vset.pattern.permute.xlu0 0
        %692 = vperm.xlu0 %691, %v674
        %v693 = vpop.permute.xlu0 %692
        %696 = vset.pattern.permute.xlu0 0
        %697 = vperm.xlu0 %696, %v675
        %v698 = vpop.permute.xlu0 %697
        %701 = vset.pattern.permute.xlu0 0
        %702 = vperm.xlu0 %701, %v676
        %v703 = vpop.permute.xlu0 %702
        %v705 = vmul.f32 %v669, %v688
        %v706 = vmul.f32 %v670, %v693
        %v707 = vmul.f32 %v671, %v698
        %v708 = vmul.f32 %v672, %v703
        %710 = vset.pattern.permute.xlu0 0
        %711 = vperm.xlu0 %710, %v677
        %v712 = vpop.permute.xlu0 %711
        %715 = vset.pattern.permute.xlu0 0
        %716 = vperm.xlu0 %715, %v678
        %v717 = vpop.permute.xlu0 %716
        %720 = vset.pattern.permute.xlu0 0
        %721 = vperm.xlu0 %720, %v679
        %v722 = vpop.permute.xlu0 %721
        %725 = vset.pattern.permute.xlu0 0
        %726 = vperm.xlu0 %725, %v680
        %v727 = vpop.permute.xlu0 %726
        %v729 = vadd.f32 %v705, %v712
        %v730 = vadd.f32 %v706, %v717
        %v731 = vadd.f32 %v707, %v722
        %v732 = vadd.f32 %v708, %v727
        %v733 = vmax.f32 %v729, 0.0
        %v734 = vmax.f32 %v730, 0.0
        %v735 = vmax.f32 %v731, 0.0
        %v736 = vmax.f32 %v732, 0.0
        %v737 = vld [vmem:[%s2 + $0x40] sm:$0xf]
        %v738 = vld [vmem:[%s2 + $0x44] sm:$0xf]
        %v739 = vld [vmem:[%s2 + $0x48] sm:$0xf]
        %v740 = vld [vmem:[%s2 + $0x4c] sm:$0xf]
        %v741 = vpack.c.bf16 %v734, %v733
        %v742 = vpack.c.bf16 %v736, %v735
        %744 = vset.pattern.permute.xlu0 0
        %745 = vperm.xlu0 %744, %v681
        %v746 = vpop.permute.xlu0 %745
        %749 = vset.pattern.permute.xlu0 0
        %750 = vperm.xlu0 %749, %v682
        %v751 = vpop.permute.xlu0 %750
        %754 = vset.pattern.permute.xlu0 0
        %755 = vperm.xlu0 %754, %v683
        %v756 = vpop.permute.xlu0 %755
        %759 = vset.pattern.permute.xlu0 0
        %760 = vperm.xlu0 %759, %v684
        %v761 = vpop.permute.xlu0 %760
        %v767 = vunpack.c.l.b16 %v737
        %v768 = vunpack.c.l.b16 %v738
        %v769 = vunpack.c.l.b16 %v739
        %v770 = vunpack.c.l.b16 %v740
        %v771 = vpack.c.b16 %v768, %v767
        %v772 = vpack.c.b16 %v770, %v769
        %v774 = vsel %vm373, %v771, 0
        %v777 = vsel %vm373, %v772, 0
        %779 = vmatprep.subr.bf16.mxu0 0
        %780 = vmatpush1.bf16.msra.mxu0 0
        %781 = vmatprep.subr.bf16.mxu0 0
        %782 = vmatpush1.bf16.msra.mxu0 0
        %783 = vmatprep.subr.bf16.mxu0 0
        %784 = vmatpush1.bf16.msra.mxu0 0
        %785 = vmatprep.subr.bf16.mxu0 0
        %786 = vmatpush1.bf16.msra.mxu0 0
        %787 = vmatprep.subr.bf16.mxu0 0
        %788 = vmatpush1.bf16.msra.mxu0 0
        %789 = vmatprep.subr.bf16.mxu0 0
        %790 = vmatpush1.bf16.msra.mxu0 0
        %791 = vmatprep.subr.bf16.mxu0 0
        %792 = vmatpush1.bf16.msra.mxu0 %v742
        %793 = vmatprep.subr.bf16.mxu0 0
        %794 = vmatpush1.bf16.msra.mxu0 %v741
        %795 = vmatprep.subr.bf16.mxu0 0
        %796 = vmatpush2.bf16.msra.mxu0 0
        %797 = vmatprep.subr.bf16.mxu0 0
        %798 = vmatpush2.bf16.msra.mxu0 0
        %799 = vmatprep.subr.bf16.mxu0 0
        %800 = vmatpush2.bf16.msra.mxu0 0
        %801 = vmatprep.subr.bf16.mxu0 0
        %802 = vmatpush2.bf16.msra.mxu0 0
        %803 = vmatprep.subr.bf16.mxu0 0
        %804 = vmatpush2.bf16.msra.mxu0 0
        %805 = vmatprep.subr.bf16.mxu0 0
        %806 = vmatpush2.bf16.msra.mxu0 0
        %807 = vmatprep.subr.bf16.mxu0 0
        %808 = vmatpush2.bf16.msra.mxu0 0
        %809 = vmatprep.subr.bf16.mxu0 0
        %810 = vmatpush2.bf16.msra.mxu0 0
        %811 = vmatprep.mubr.bf16.mxu0 0
        %812 = vmatmul.mubr.bf16.gmra.mxu0 %v774
        %v813 = vpop.f32.mrf.mxu0
        %v814 = vadd.f32 %v746, %v813
        %v815 = vpop.f32.mrf.mxu0
        %v816 = vpop.f32.mrf.mxu0
        %v817 = vadd.f32 %v751, %v816
        %v818 = vpop.f32.mrf.mxu0
        %819 = vmatprep.mubr.bf16.mxu0 0
        %820 = vmatmul.mubr.bf16.gmra.mxu0 %v777
        %v821 = vpop.f32.mrf.mxu0
        %v822 = vadd.f32 %v756, %v821
        %v823 = vpop.f32.mrf.mxu0
        %v824 = vpop.f32.mrf.mxu0
        %v825 = vadd.f32 %v761, %v824
        %v826 = vpop.f32.mrf.mxu0
        %827 = vdwg.mxu0
        %v828 = vmax.f32 %v814, 0.0
        %v829 = vmax.f32 %v817, 0.0
        %v830 = vmax.f32 %v822, 0.0
        %v831 = vmax.f32 %v825, 0.0
        %v832 = vld [vmem:[%s2 + $0x50] sm:$0xf]
        %v833 = vld [vmem:[%s2 + $0x54] sm:$0xf]
        %v834 = vld [vmem:[%s2 + $0x58] sm:$0xf]
        %v835 = vpack.c.bf16 %v829, %v828
        %v836 = vpack.c.bf16 %v831, %v830
        %v840 = vunpack.c.l.b16 %v832
        %v841 = vunpack.c.l.b16 %v833
        %v842 = vunpack.c.l.b16 %v834
        %v843 = vpack.c.b16 %v841, %v840
        %v844 = vpack.c.b16 %v842, %v842
        %v846 = vsel %vm373, %v843, 0
        %v849 = vsel %vm373, %v844, 0
        %851 = vmatprep.subr.bf16.mxu0 0
        %852 = vmatpush1.bf16.msra.mxu0 0
        %853 = vmatprep.subr.bf16.mxu0 0
        %854 = vmatpush1.bf16.msra.mxu0 0
        %855 = vmatprep.subr.bf16.mxu0 0
        %856 = vmatpush1.bf16.msra.mxu0 0
        %857 = vmatprep.subr.bf16.mxu0 0
        %858 = vmatpush1.bf16.msra.mxu0 0
        %859 = vmatprep.subr.bf16.mxu0 0
        %860 = vmatpush1.bf16.msra.mxu0 0
        %861 = vmatprep.subr.bf16.mxu0 0
        %862 = vmatpush1.bf16.msra.mxu0 0
        %863 = vmatprep.subr.bf16.mxu0 0
        %864 = vmatpush1.bf16.msra.mxu0 %v836
        %865 = vmatprep.subr.bf16.mxu0 0
        %866 = vmatpush1.bf16.msra.mxu0 %v835
        %867 = vmatprep.subr.bf16.mxu0 0
        %868 = vmatpush2.bf16.msra.mxu0 0
        %869 = vmatprep.subr.bf16.mxu0 0
        %870 = vmatpush2.bf16.msra.mxu0 0
        %871 = vmatprep.subr.bf16.mxu0 0
        %872 = vmatpush2.bf16.msra.mxu0 0
        %873 = vmatprep.subr.bf16.mxu0 0
        %874 = vmatpush2.bf16.msra.mxu0 0
        %875 = vmatprep.subr.bf16.mxu0 0
        %876 = vmatpush2.bf16.msra.mxu0 0
        %877 = vmatprep.subr.bf16.mxu0 0
        %878 = vmatpush2.bf16.msra.mxu0 0
        %879 = vmatprep.subr.bf16.mxu0 0
        %880 = vmatpush2.bf16.msra.mxu0 0
        %881 = vmatprep.subr.bf16.mxu0 0
        %882 = vmatpush2.bf16.msra.mxu0 0
        %883 = vmatprep.mubr.bf16.mxu0 0
        %884 = vmatmul.mubr.bf16.gmra.mxu0 %v846
        %v885 = vpop.f32.mrf.mxu0
        %v886 = vadd.f32 0.0, %v885
        %v887 = vpop.f32.mrf.mxu0
        %v888 = vpop.f32.mrf.mxu0
        %v889 = vadd.f32 0.0, %v888
        %v890 = vpop.f32.mrf.mxu0
        %891 = vmatprep.mubr.bf16.mxu0 0
        %892 = vmatmul.mubr.bf16.gmra.mxu0 %v849
        %v893 = vpop.f32.mrf.mxu0
        %v894 = vadd.f32 0.0, %v893
        %v895 = vpop.f32.mrf.mxu0
        %v896 = vpop.f32.mrf.mxu0
        %v897 = vpop.f32.mrf.mxu0
        %898 = vdwg.mxu0
        %899 = vrot.lane.b32.xlu0 %v886, 1
        %v900 = vpop.permute.xlu0 %899
        %901 = vrot.lane.b32.xlu0 %v894, 127
        %v902 = vpop.permute.xlu0 %901
        %v903 = vsel %vm433, %v900, 0.0
        %v904 = vadd.f32 %v889, %v903
        %v905 = vsel %vm437, %v902, 0.0
        %v906 = vadd.f32 %v904, %v905
        %907 = vst [vmem:[%s207 + $0x20] sm:$0xff] %v906
        %s908 = sand.u32 %s93, 1
        %s909 = scalar_lea.sflag [#allocation4], %s908
        %s910 = sand.u32 %s93, 1
        %s911 = smul.addr %s910, 40
        %s912 = scalar_lea.vmem [#allocation3], %s911
        // Predicated region
        $region71: #{tpu_custom_call.1} parent=65 // pred_check
          %p913 = pneg %p103
        $region72: #{tpu_custom_call.1} parent=65 // pred_check_branch
          %915 = sbr.rel (%p913) target = $region74
        $region73: #{tpu_custom_call.1} parent=65 // pred_region
          %s917 = ssub.s32 640, 640
          %918 = vsyncadd %s909, %s917
          %s919 = smul.addr %s17, 128
          %s920 = scalar_lea.hbm %s3, %s919
          %s921 = sshll.u32 %s912, 4
          %s922 = int_to_ptr.vmem [resolvable:$true] %s921
          %927 = dma.vmem_to_hbm [thread:$0]  %s922, 640, %s920, %s909, 128, 256, 8
        $region74: #{tpu_custom_call.1} parent=65 // pred_fallthru
          _
      $region66: #{tpu_custom_call.1} parent=5 // pred_fallthru
        _
      %p928 = scmp.le.s32.totalorder 2, %s12
      // Predicated region
      $region75: #{tpu_custom_call.1} parent=5 // pred_check
        %p929 = pneg %p928
      $region76: #{tpu_custom_call.1} parent=5 // pred_check_branch
        %931 = sbr.rel (%p929) target = $region78
      $region77: #{tpu_custom_call.1} parent=5 // pred_region
        %s932 = ssub.s32 %s12, 2
        // Predicated region
        $region79: #{tpu_custom_call.1} parent=77 // pred_check
          %p933 = pneg %p109
        $region80: #{tpu_custom_call.1} parent=77 // pred_check_branch
          %935 = sbr.rel (%p933) target = $region82
        $region81: #{tpu_custom_call.1} parent=77 // pred_region
          %s936 = sand.u32 %s94, 1
          %s937 = scalar_lea.sflag [#allocation4], %s936
          %s938 = sand.u32 %s94, 1
          %s939 = smul.addr %s938, 40
          %s940 = scalar_lea.vmem [#allocation3], %s939
          %941 = dma.done %s937, 640
        $region82: #{tpu_custom_call.1} parent=77 // pred_fallthru
          _
      $region78: #{tpu_custom_call.1} parent=5 // pred_fallthru
        _
    $region6: #{tpu_custom_call.1} parent=1 // loop_footer
      %s16 = sadd.s32 1, %s12
    $region7: #{tpu_custom_call.1} parent=1 // loop_footer_branch
      %11 = sbr.rel target = $region3
    $region8: #{tpu_custom_call.1} parent=1 // loop_exit
      _
    %942 = vsyncpa [#allocation4], 1
    %s943 = scalar_lea.sflag [#allocation4], 1
    %944 = vsyncpa %s943, 1

</llo_original>
